<compile_context>
chip_gen: v5e
topology: v5e:2x2
jax: 0.10.0
libtpu: 0.0.40
codegen_flags: <defaults>
</compile_context>

<pallas_src>
import jax
import jax.numpy as jnp
from jax.experimental import pallas as pl
from jax.experimental.pallas import tpu as pltpu

HIDDEN = 128   # fc1/fc2 width from the PyTorch module
LANE = 128     # TPU lane width -> pad fc3 out-dim to a multiple of this
SUBLANE = 8    # sublane granularity for batch-tile sizes


def _mlp_kernel(x_ref, w1_ref, b1_ref, w2_ref, b2_ref, w3_ref, b3_ref, o_ref):
    """One batch tile per grid step: relu(x@W1+b1) -> relu(.@W2+b2) -> .@W3+b3."""
    wdt = w1_ref.dtype  # bf16 on the fast path, f32 otherwise
    x = x_ref[...]
    h1 = jnp.dot(x.astype(wdt), w1_ref[...], preferred_element_type=jnp.float32)
    h1 = jnp.maximum(h1 + b1_ref[...], 0.0)            # bias-add / ReLU in f32
    h2 = jnp.dot(h1.astype(wdt), w2_ref[...], preferred_element_type=jnp.float32)
    h2 = jnp.maximum(h2 + b2_ref[...], 0.0)
    out = jnp.dot(h2.astype(wdt), w3_ref[...], preferred_element_type=jnp.float32)
    o_ref[...] = (out + b3_ref[...]).astype(o_ref.dtype)


def network_forward(x, params, *, block_batch=256):
    """params = (w1, b1, w2, b2, w3, b3); weights (in, out), biases (1, out)."""
    w1, b1, w2, b2, w3, b3 = params
    batch, state_size = x.shape
    action_size = w3.shape[1]

    # Lane-dense output: zero-pad fc3's out-dim up to a multiple of 128 so the final
    # store is an unmasked full-lane vst; slice the real columns back off outside.
    n_pad = max(LANE, -(-action_size // LANE) * LANE)
    if n_pad != action_size:
        w3 = jnp.pad(w3, ((0, 0), (0, n_pad - action_size)))
        b3 = jnp.pad(b3, ((0, 0), (0, n_pad - action_size)))

    # Batch tiling: pick a tile that is a multiple of the 8-row sublane granularity,
    # pad the batch up to a multiple of it, and iterate tiles on a 1-D grid.
    tb = min(block_batch, batch)
    tb = -(-tb // SUBLANE) * SUBLANE          # round up to a sublane multiple
    pad_b = -batch % tb
    if pad_b:
        x = jnp.pad(x, ((0, pad_b), (0, 0)))
    padded_batch = batch + pad_b
    grid = (padded_batch // tb,)

    const = lambda i: (0, 0)
    out_padded = pl.pallas_call(
        _mlp_kernel,
        out_shape=jax.ShapeDtypeStruct((padded_batch, n_pad), jnp.float32),
        grid=grid,
        in_specs=[
            pl.BlockSpec((tb, state_size), lambda i: (i, 0)),   # x tile (streams)
            pl.BlockSpec((state_size, HIDDEN), const),          # w1 (VMEM-resident)
            pl.BlockSpec((1, HIDDEN), const),                   # b1
            pl.BlockSpec((HIDDEN, HIDDEN), const),              # w2 (VMEM-resident)
            pl.BlockSpec((1, HIDDEN), const),                   # b2
            pl.BlockSpec((HIDDEN, n_pad), const),               # w3 (resident, lane-padded)
            pl.BlockSpec((1, n_pad), const),                    # b3
        ],
        out_specs=pl.BlockSpec((tb, n_pad), lambda i: (i, 0)),  # lane-dense output tile
        compiler_params=pltpu.CompilerParams(
            dimension_semantics=("parallel",),  # batch tiles are independent
        ),
    )(x, w1, b1, w2, b2, w3, b3)
    return out_padded[:batch, :action_size]


def init_params(key, state_size, action_size, weight_dtype=jnp.float32):
    """PyTorch-default Linear init (U[-1/sqrt(fan_in), +1/sqrt(fan_in)]).

    Biases stay f32 (added to the f32 accumulator); weights may be bf16 for the
    MXU fast path (halves weight DMA, keeps f32 accumulation).
    """
    def linear(key, fan_in, fan_out):
        kw, kb = jax.random.split(key)
        bound = 1.0 / jnp.sqrt(fan_in)
        w = jax.random.uniform(kw, (fan_in, fan_out), jnp.float32, -bound, bound)
        b = jax.random.uniform(kb, (1, fan_out), jnp.float32, -bound, bound)
        return w.astype(weight_dtype), b

    k1, k2, k3 = jax.random.split(key, 3)
    w1, b1 = linear(k1, state_size, HIDDEN)
    w2, b2 = linear(k2, HIDDEN, HIDDEN)
    w3, b3 = linear(k3, HIDDEN, action_size)
    return (w1, b1, w2, b2, w3, b3)


if __name__ == "__main__":
    state_size = 32
    action_size = 8
    batch = 128          # tiles into 2 grid steps of 64 rows with block_batch=64

    key = jax.random.PRNGKey(0)
    kx, kp = jax.random.split(key)
    x = jax.random.normal(kx, (batch, state_size), jnp.float32)

    # f32 weights: matches the PyTorch forward semantics.
    params_f32 = init_params(kp, state_size, action_size, jnp.float32)
    out = network_forward(x, params_f32, block_batch=64)
    jax.block_until_ready(out)

    # Pure-JAX reference of the same forward pass.
    w1, b1, w2, b2, w3, b3 = params_f32
    ref = jnp.maximum(x @ w1 + b1, 0.0)
    ref = jnp.maximum(ref @ w2 + b2, 0.0)
    ref = ref @ w3 + b3
    assert out.shape == (batch, action_size)
    assert jnp.allclose(out, ref, atol=1e-5, rtol=1e-5)

    # bf16 weights (MXU bf16 path; f32 accumulation + f32 bias/ReLU kept in-kernel).
    params_bf16 = init_params(kp, state_size, action_size, jnp.bfloat16)
    out_bf16 = network_forward(x, params_bf16, block_batch=64)
    jax.block_until_ready(out_bf16)
    assert jnp.allclose(out_bf16, ref, atol=5e-2, rtol=5e-2)

    print("KERNEL_OK")
</pallas_src>

<mosaic_0001>
module attributes {stable_mosaic.version = 11 : i64} {
  func.func @_mlp_kernel(%arg0: i32, %arg1: memref<64x32xf32, #tpu.memory_space<vmem>>, %arg2: memref<32x128xf32, #tpu.memory_space<vmem>>, %arg3: memref<1x128xf32, #tpu.memory_space<vmem>>, %arg4: memref<128x128xf32, #tpu.memory_space<vmem>>, %arg5: memref<1x128xf32, #tpu.memory_space<vmem>>, %arg6: memref<128x128xf32, #tpu.memory_space<vmem>>, %arg7: memref<1x128xf32, #tpu.memory_space<vmem>>, %arg8: memref<64x128xf32, #tpu.memory_space<vmem>>) attributes {dimension_semantics = [#tpu.dimension_semantics<parallel>], iteration_bounds = array<i64: 2>, scalar_prefetch = 0 : i64, scratch_operands = 0 : i64, tpu.core_type = #tpu.core_type<tc>, window_params = [{transform_indices = @transform_0, window_bounds = array<i64: 64, 32>}, {pipeline_mode = #tpu.pipeline_mode<synchronous>, transform_indices = @transform_1, window_bounds = array<i64: 32, 128>}, {pipeline_mode = #tpu.pipeline_mode<synchronous>, transform_indices = @transform_2, window_bounds = array<i64: 1, 128>}, {pipeline_mode = #tpu.pipeline_mode<synchronous>, transform_indices = @transform_3, window_bounds = array<i64: 128, 128>}, {pipeline_mode = #tpu.pipeline_mode<synchronous>, transform_indices = @transform_4, window_bounds = array<i64: 1, 128>}, {pipeline_mode = #tpu.pipeline_mode<synchronous>, transform_indices = @transform_5, window_bounds = array<i64: 128, 128>}, {pipeline_mode = #tpu.pipeline_mode<synchronous>, transform_indices = @transform_6, window_bounds = array<i64: 1, 128>}, {transform_indices = @transform_7, window_bounds = array<i64: 64, 128>}]} {
    %c0 = arith.constant 0 : index
    %c0_0 = arith.constant 0 : index
    %0 = vector.load %arg1[%c0, %c0_0] : memref<64x32xf32, #tpu.memory_space<vmem>>, vector<64x32xf32>
    %c0_1 = arith.constant 0 : index
    %c0_2 = arith.constant 0 : index
    %1 = vector.load %arg2[%c0_1, %c0_2] : memref<32x128xf32, #tpu.memory_space<vmem>>, vector<32x128xf32>
    %cst = arith.constant dense<0.000000e+00> : vector<64x128xf32>
    %2 = tpu.matmul %0, %1, %cst {dimension_numbers = #tpu.dot_dimension_numbers<[1], [0], [0], [1], [0, 0, 1, 1], [], []>} : vector<64x32xf32>, vector<32x128xf32>, vector<64x128xf32> -> vector<64x128xf32>
    %c0_3 = arith.constant 0 : index
    %c0_4 = arith.constant 0 : index
    %3 = vector.load %arg3[%c0_3, %c0_4] : memref<1x128xf32, #tpu.memory_space<vmem>>, vector<1x128xf32>
    %4 = vector.broadcast %3 : vector<1x128xf32> to vector<64x128xf32>
    %5 = arith.addf %2, %4 : vector<64x128xf32>
    %cst_5 = arith.constant 0.000000e+00 : f32
    %6 = vector.broadcast %cst_5 : f32 to vector<64x128xf32>
    %7 = arith.maximumf %5, %6 : vector<64x128xf32>
    %c0_6 = arith.constant 0 : index
    %c0_7 = arith.constant 0 : index
    %8 = vector.load %arg4[%c0_6, %c0_7] : memref<128x128xf32, #tpu.memory_space<vmem>>, vector<128x128xf32>
    %cst_8 = arith.constant dense<0.000000e+00> : vector<64x128xf32>
    %9 = tpu.matmul %7, %8, %cst_8 {dimension_numbers = #tpu.dot_dimension_numbers<[1], [0], [0], [1], [0, 0, 1, 1], [], []>} : vector<64x128xf32>, vector<128x128xf32>, vector<64x128xf32> -> vector<64x128xf32>
    %c0_9 = arith.constant 0 : index
    %c0_10 = arith.constant 0 : index
    %10 = vector.load %arg5[%c0_9, %c0_10] : memref<1x128xf32, #tpu.memory_space<vmem>>, vector<1x128xf32>
    %11 = vector.broadcast %10 : vector<1x128xf32> to vector<64x128xf32>
    %12 = arith.addf %9, %11 : vector<64x128xf32>
    %cst_11 = arith.constant 0.000000e+00 : f32
    %13 = vector.broadcast %cst_11 : f32 to vector<64x128xf32>
    %14 = arith.maximumf %12, %13 : vector<64x128xf32>
    %c0_12 = arith.constant 0 : index
    %c0_13 = arith.constant 0 : index
    %15 = vector.load %arg6[%c0_12, %c0_13] : memref<128x128xf32, #tpu.memory_space<vmem>>, vector<128x128xf32>
    %cst_14 = arith.constant dense<0.000000e+00> : vector<64x128xf32>
    %16 = tpu.matmul %14, %15, %cst_14 {dimension_numbers = #tpu.dot_dimension_numbers<[1], [0], [0], [1], [0, 0, 1, 1], [], []>} : vector<64x128xf32>, vector<128x128xf32>, vector<64x128xf32> -> vector<64x128xf32>
    %c0_15 = arith.constant 0 : index
    %c0_16 = arith.constant 0 : index
    %17 = vector.load %arg7[%c0_15, %c0_16] : memref<1x128xf32, #tpu.memory_space<vmem>>, vector<1x128xf32>
    %18 = vector.broadcast %17 : vector<1x128xf32> to vector<64x128xf32>
    %19 = arith.addf %16, %18 : vector<64x128xf32>
    %c0_17 = arith.constant 0 : index
    %c0_18 = arith.constant 0 : index
    %20 = vector.load %arg8[%c0_17, %c0_18] : memref<64x128xf32, #tpu.memory_space<vmem>>, vector<64x128xf32>
    tpu.vector_store %arg8[%c0_17, %c0_18], %19 {strides = array<i32>} : memref<64x128xf32, #tpu.memory_space<vmem>>, vector<64x128xf32>,
    return
  }
  func.func @transform_0(%arg0: i32) -> (i32, i32) {
    %c0_i32 = arith.constant 0 : i32
    %c0_i32_0 = arith.constant 0 : i32
    return %arg0, %c0_i32 : i32, i32
  }
  func.func @transform_1(%arg0: i32) -> (i32, i32) {
    %c0_i32 = arith.constant 0 : i32
    %c0_i32_0 = arith.constant 0 : i32
    %c0_i32_1 = arith.constant 0 : i32
    return %c0_i32, %c0_i32_0 : i32, i32
  }
  func.func @transform_2(%arg0: i32) -> (i32, i32) {
    %c0_i32 = arith.constant 0 : i32
    %c0_i32_0 = arith.constant 0 : i32
    %c0_i32_1 = arith.constant 0 : i32
    return %c0_i32, %c0_i32_0 : i32, i32
  }
  func.func @transform_3(%arg0: i32) -> (i32, i32) {
    %c0_i32 = arith.constant 0 : i32
    %c0_i32_0 = arith.constant 0 : i32
    %c0_i32_1 = arith.constant 0 : i32
    return %c0_i32, %c0_i32_0 : i32, i32
  }
  func.func @transform_4(%arg0: i32) -> (i32, i32) {
    %c0_i32 = arith.constant 0 : i32
    %c0_i32_0 = arith.constant 0 : i32
    %c0_i32_1 = arith.constant 0 : i32
    return %c0_i32, %c0_i32_0 : i32, i32
  }
  func.func @transform_5(%arg0: i32) -> (i32, i32) {
    %c0_i32 = arith.constant 0 : i32
    %c0_i32_0 = arith.constant 0 : i32
    %c0_i32_1 = arith.constant 0 : i32
    return %c0_i32, %c0_i32_0 : i32, i32
  }
  func.func @transform_6(%arg0: i32) -> (i32, i32) {
    %c0_i32 = arith.constant 0 : i32
    %c0_i32_0 = arith.constant 0 : i32
    %c0_i32_1 = arith.constant 0 : i32
    return %c0_i32, %c0_i32_0 : i32, i32
  }
  func.func @transform_7(%arg0: i32) -> (i32, i32) {
    %c0_i32 = arith.constant 0 : i32
    %c0_i32_0 = arith.constant 0 : i32
    return %arg0, %c0_i32 : i32, i32
  }
}

</mosaic_0001>

<llo_original>
// kernel: tpu_custom_call.1
$region0: #{tpu_custom_call.1}
  #allocation0 [shape = 'u32[]', space=smem, size = 0x4, offset = 0x4, fixed_abs, tag = 'smem constant byte address 0x4 - core index']
  #allocation1 [shape = 'u32[72,128]{1,0:T(1,128)}', space=vmem, size = 0x9000, scoped, tag = 'internal scratch']
  %s0 = inlined_call_operand.vmem [shape: f32[128,32], index: 0, kind: input, shape index: {}]
  %s1 = inlined_call_operand.vmem [shape: f32[32,128], index: 1, kind: input, shape index: {}]
  %s2 = inlined_call_operand.vmem [shape: f32[1,128], index: 2, kind: input, shape index: {}]
  %s3 = inlined_call_operand.vmem [shape: f32[128,128], index: 3, kind: input, shape index: {}]
  %s4 = inlined_call_operand.vmem [shape: f32[1,128], index: 4, kind: input, shape index: {}]
  %s5 = inlined_call_operand.hbm [shape: f32[128,128], index: 5, kind: input, shape index: {}]
  %s6 = inlined_call_operand.vmem [shape: f32[1,128], index: 6, kind: input, shape index: {}]
  %s7 = inlined_call_operand.hbm [shape: f32[128,128], index: 7, kind: output, shape index: {}]
  %s8 = sld [smem:[#allocation0]]
  $region65: #{tpu_custom_call.1} parent=0
    _
  %s10 = ssub.s32 1, %s8
  %s11 = scalar_select 0, %s10, %s8
  $region1: #{tpu_custom_call.1} parent=0
    #allocation2 [shape = 'u8[65536]{0}', space=vmem, size = 0x10000, scoped, tag = 'input window, operand 5, single buffered']
    #allocation3 [shape = 's32[2]{0}', space=sflag, size = 0x8, scoped, tag = 'scoped memory for tpu_custom_call.1']
    #allocation4 [shape = 's32[2]{0}', space=sflag, size = 0x8, scoped, tag = 'scoped memory for tpu_custom_call.1']
    #allocation5 [shape = 'u8[65536]{0}', space=vmem, size = 0x10000, scoped, tag = 'output window, operand 0']
    %12 = vsyncpa [#allocation3], 0
    %13 = vsyncpa [#allocation4], 0
    %s14 = scalar_lea.sflag [#allocation4], 1
    %15 = vsyncpa %s14, 0
    loop: start=0, step=1, limit=4
    $region2: #{tpu_custom_call.1} parent=1 // loop_pre_header
      _
    $region3: #{tpu_custom_call.1} parent=1 // loop_header
      %s17 = sphi 0, %s21
      %p18 = scmp.ge.s32.totalorder %s17, 4
      %s27 = sphi 0, %s29
      %s30 = sphi 0, %s27
      %s31 = sphi 0, %s30
      %s47 = sphi 0, %s31
      %s51 = sphi 0, %s51
      %s53 = sphi 0, %s51
      %s54 = sphi 0, %s53
      %s68 = sphi 0, %s54
      %s72 = sphi 0, %s72
      %s74 = sphi 0, %s72
      %s75 = sphi 0, %s74
      %s89 = sphi 0, %s75
      %s93 = sphi 0, %s93
      %s95 = sphi 0, %s93
      %s96 = sphi 0, %s95
      %s110 = sphi 0, %s96
      %s114 = sphi 0, %s114
      %s116 = sphi 0, %s114
      %s117 = sphi 0, %s116
      %s131 = sphi 0, %s117
      %s135 = sphi 0, %s135
      %s137 = sphi 0, %s135
      %s138 = sphi 0, %s137
      %s152 = sphi 0, %s138
      %s156 = sphi 0, %s156
      %s158 = sphi 0, %s156
      %s159 = sphi 0, %s158
      %s173 = sphi 0, %s159
      %s179 = sphi 0, %s181
      %s182 = sphi 0, %s179
      %s183 = sphi 0, %s182
      %s199 = sphi 0, %s183
    $region4: #{tpu_custom_call.1} parent=1 // loop_header_branch
      %20 = sbr.rel (%p18) target = $region8
    $region5: #{tpu_custom_call.1} parent=1 // loop_body
      %s22 = ssub.s32 %s17, 1
      %s23 = ssub.s32 %s17, 2
      %s24 = sadd.s32 %s17, 1
      %s25 = ssub.s32 %s17, %s24
      %p26 = scmp.eq.s32.totalorder %s25, 0
      %s28 = sadd.s32 %s27, 1
      %s29 = scalar_select %p26, %s27, %s28
      %p32 = pneg %p26
      %p33 = scmp.eq.s32.totalorder %s17, 1
      %p34 = por %p32, %p33
      %p35 = scmp.ne.s32.totalorder %s27, %s30
      %p36 = scmp.eq.s32.totalorder %s17, 0
      %p37 = por %p35, %p36
      %p38 = scmp.ne.s32.totalorder %s27, %s30
      %p39 = scmp.eq.s32.totalorder %s22, 1
      %p40 = por %p38, %p39
      %p41 = scmp.ne.s32.totalorder %s30, %s31
      %p42 = scmp.eq.s32.totalorder %s22, 0
      %p43 = por %p41, %p42
      %p44 = scmp.ne.s32.totalorder %s30, %s31
      %p45 = scmp.eq.s32.totalorder %s23, 1
      %p46 = por %p44, %p45
      %p48 = scmp.ne.s32.totalorder %s31, %s47
      %p49 = scmp.eq.s32.totalorder %s23, 0
      %p50 = por %p48, %p49
      %s52 = sadd.s32 %s51, 1
      %p55 = scmp.eq.s32.totalorder %s17, 1
      %p56 = scmp.ne.s32.totalorder %s51, %s53
      %p57 = scmp.eq.s32.totalorder %s17, 0
      %p58 = por %p56, %p57
      %p59 = scmp.ne.s32.totalorder %s51, %s53
      %p60 = scmp.eq.s32.totalorder %s22, 1
      %p61 = por %p59, %p60
      %p62 = scmp.ne.s32.totalorder %s53, %s54
      %p63 = scmp.eq.s32.totalorder %s22, 0
      %p64 = por %p62, %p63
      %p65 = scmp.ne.s32.totalorder %s53, %s54
      %p66 = scmp.eq.s32.totalorder %s23, 1
      %p67 = por %p65, %p66
      %p69 = scmp.ne.s32.totalorder %s54, %s68
      %p70 = scmp.eq.s32.totalorder %s23, 0
      %p71 = por %p69, %p70
      %s73 = sadd.s32 %s72, 1
      %p76 = scmp.eq.s32.totalorder %s17, 1
      %p77 = scmp.ne.s32.totalorder %s72, %s74
      %p78 = scmp.eq.s32.totalorder %s17, 0
      %p79 = por %p77, %p78
      %p80 = scmp.ne.s32.totalorder %s72, %s74
      %p81 = scmp.eq.s32.totalorder %s22, 1
      %p82 = por %p80, %p81
      %p83 = scmp.ne.s32.totalorder %s74, %s75
      %p84 = scmp.eq.s32.totalorder %s22, 0
      %p85 = por %p83, %p84
      %p86 = scmp.ne.s32.totalorder %s74, %s75
      %p87 = scmp.eq.s32.totalorder %s23, 1
      %p88 = por %p86, %p87
      %p90 = scmp.ne.s32.totalorder %s75, %s89
      %p91 = scmp.eq.s32.totalorder %s23, 0
      %p92 = por %p90, %p91
      %s94 = sadd.s32 %s93, 1
      %p97 = scmp.eq.s32.totalorder %s17, 1
      %p98 = scmp.ne.s32.totalorder %s93, %s95
      %p99 = scmp.eq.s32.totalorder %s17, 0
      %p100 = por %p98, %p99
      %p101 = scmp.ne.s32.totalorder %s93, %s95
      %p102 = scmp.eq.s32.totalorder %s22, 1
      %p103 = por %p101, %p102
      %p104 = scmp.ne.s32.totalorder %s95, %s96
      %p105 = scmp.eq.s32.totalorder %s22, 0
      %p106 = por %p104, %p105
      %p107 = scmp.ne.s32.totalorder %s95, %s96
      %p108 = scmp.eq.s32.totalorder %s23, 1
      %p109 = por %p107, %p108
      %p111 = scmp.ne.s32.totalorder %s96, %s110
      %p112 = scmp.eq.s32.totalorder %s23, 0
      %p113 = por %p111, %p112
      %s115 = sadd.s32 %s114, 1
      %p118 = scmp.eq.s32.totalorder %s17, 1
      %p119 = scmp.ne.s32.totalorder %s114, %s116
      %p120 = scmp.eq.s32.totalorder %s17, 0
      %p121 = por %p119, %p120
      %p122 = scmp.ne.s32.totalorder %s114, %s116
      %p123 = scmp.eq.s32.totalorder %s22, 1
      %p124 = por %p122, %p123
      %p125 = scmp.ne.s32.totalorder %s116, %s117
      %p126 = scmp.eq.s32.totalorder %s22, 0
      %p127 = por %p125, %p126
      %p128 = scmp.ne.s32.totalorder %s116, %s117
      %p129 = scmp.eq.s32.totalorder %s23, 1
      %p130 = por %p128, %p129
      %p132 = scmp.ne.s32.totalorder %s117, %s131
      %p133 = scmp.eq.s32.totalorder %s23, 0
      %p134 = por %p132, %p133
      %s136 = sadd.s32 %s135, 1
      %p139 = scmp.eq.s32.totalorder %s17, 1
      %p140 = scmp.ne.s32.totalorder %s135, %s137
      %p141 = scmp.eq.s32.totalorder %s17, 0
      %p142 = por %p140, %p141
      %p143 = scmp.ne.s32.totalorder %s135, %s137
      %p144 = scmp.eq.s32.totalorder %s22, 1
      %p145 = por %p143, %p144
      %p146 = scmp.ne.s32.totalorder %s137, %s138
      %p147 = scmp.eq.s32.totalorder %s22, 0
      %p148 = por %p146, %p147
      %p149 = scmp.ne.s32.totalorder %s137, %s138
      %p150 = scmp.eq.s32.totalorder %s23, 1
      %p151 = por %p149, %p150
      %p153 = scmp.ne.s32.totalorder %s138, %s152
      %p154 = scmp.eq.s32.totalorder %s23, 0
      %p155 = por %p153, %p154
      %s157 = sadd.s32 %s156, 1
      %p160 = scmp.eq.s32.totalorder %s17, 1
      %p161 = scmp.ne.s32.totalorder %s156, %s158
      %p162 = scmp.eq.s32.totalorder %s17, 0
      %p163 = por %p161, %p162
      %p164 = scmp.ne.s32.totalorder %s156, %s158
      %p165 = scmp.eq.s32.totalorder %s22, 1
      %p166 = por %p164, %p165
      %p167 = scmp.ne.s32.totalorder %s158, %s159
      %p168 = scmp.eq.s32.totalorder %s22, 0
      %p169 = por %p167, %p168
      %p170 = scmp.ne.s32.totalorder %s158, %s159
      %p171 = scmp.eq.s32.totalorder %s23, 1
      %p172 = por %p170, %p171
      %p174 = scmp.ne.s32.totalorder %s159, %s173
      %p175 = scmp.eq.s32.totalorder %s23, 0
      %p176 = por %p174, %p175
      %s177 = ssub.s32 %s17, %s24
      %p178 = scmp.eq.s32.totalorder %s177, 0
      %s180 = sadd.s32 %s179, 1
      %s181 = scalar_select %p178, %s179, %s180
      %p184 = pneg %p178
      %p185 = scmp.eq.s32.totalorder %s17, 1
      %p186 = por %p184, %p185
      %p187 = scmp.ne.s32.totalorder %s179, %s182
      %p188 = scmp.eq.s32.totalorder %s17, 0
      %p189 = por %p187, %p188
      %p190 = scmp.ne.s32.totalorder %s179, %s182
      %p191 = scmp.eq.s32.totalorder %s22, 1
      %p192 = por %p190, %p191
      %p193 = scmp.ne.s32.totalorder %s182, %s183
      %p194 = scmp.eq.s32.totalorder %s22, 0
      %p195 = por %p193, %p194
      %p196 = scmp.ne.s32.totalorder %s182, %s183
      %p197 = scmp.eq.s32.totalorder %s23, 1
      %p198 = por %p196, %p197
      %p200 = scmp.ne.s32.totalorder %s183, %s199
      %p201 = scmp.eq.s32.totalorder %s23, 0
      %p202 = por %p200, %p201
      %p203 = scmp.le.s32.totalorder 1, %s17
      %p204 = scmp.lt.s32.totalorder %s17, 3
      %p205 = pnand %p203, %p204
      %p206 = pneg %p205
      // Predicated region
      $region9: #{tpu_custom_call.1} parent=5 // pred_check
        _
      $region10: #{tpu_custom_call.1} parent=5 // pred_check_branch
        %208 = sbr.rel (%p205) target = $region12
      $region11: #{tpu_custom_call.1} parent=5 // pred_region
        %s209 = ssub.s32 %s17, 1
        // Predicated region
        $region13: #{tpu_custom_call.1} parent=11 // pred_check
          %p210 = pneg %p64
        $region14: #{tpu_custom_call.1} parent=11 // pred_check_branch
          %212 = sbr.rel (%p210) target = $region16
        $region15: #{tpu_custom_call.1} parent=11 // pred_region
          _
        $region16: #{tpu_custom_call.1} parent=11 // pred_fallthru
          _
        // Predicated region
        $region17: #{tpu_custom_call.1} parent=11 // pred_check
          %p213 = pneg %p85
        $region18: #{tpu_custom_call.1} parent=11 // pred_check_branch
          %215 = sbr.rel (%p213) target = $region20
        $region19: #{tpu_custom_call.1} parent=11 // pred_region
          _
        $region20: #{tpu_custom_call.1} parent=11 // pred_fallthru
          _
        // Predicated region
        $region21: #{tpu_custom_call.1} parent=11 // pred_check
          %p216 = pneg %p106
        $region22: #{tpu_custom_call.1} parent=11 // pred_check_branch
          %218 = sbr.rel (%p216) target = $region24
        $region23: #{tpu_custom_call.1} parent=11 // pred_region
          _
        $region24: #{tpu_custom_call.1} parent=11 // pred_fallthru
          _
        // Predicated region
        $region25: #{tpu_custom_call.1} parent=11 // pred_check
          %p219 = pneg %p127
        $region26: #{tpu_custom_call.1} parent=11 // pred_check_branch
          %221 = sbr.rel (%p219) target = $region28
        $region27: #{tpu_custom_call.1} parent=11 // pred_region
          _
        $region28: #{tpu_custom_call.1} parent=11 // pred_fallthru
          _
        // Predicated region
        $region29: #{tpu_custom_call.1} parent=11 // pred_check
          %p222 = pneg %p148
        $region30: #{tpu_custom_call.1} parent=11 // pred_check_branch
          %224 = sbr.rel (%p222) target = $region32
        $region31: #{tpu_custom_call.1} parent=11 // pred_region
          %226 = vsyncadd [#allocation3], 0
          %s227 = sshll.u32 %s5, 4
          %s228 = int_to_ptr.hbm [resolvable:$true] %s227
          %s229 = sshll.u32 [#allocation2], 4
          %s230 = int_to_ptr.vmem [resolvable:$true] %s229
          %235 = dma.hbm_to_vmem [thread:$0]  %s228, 2048, %s230, [#allocation3], 128, 128, 8
        $region32: #{tpu_custom_call.1} parent=11 // pred_fallthru
          _
        // Predicated region
        $region33: #{tpu_custom_call.1} parent=11 // pred_check
          %p236 = pneg %p169
        $region34: #{tpu_custom_call.1} parent=11 // pred_check_branch
          %238 = sbr.rel (%p236) target = $region36
        $region35: #{tpu_custom_call.1} parent=11 // pred_region
          _
        $region36: #{tpu_custom_call.1} parent=11 // pred_fallthru
          _
      $region12: #{tpu_custom_call.1} parent=5 // pred_fallthru
        _
      %p239 = scmp.lt.s32.totalorder %s17, 2
      // Predicated region
      $region37: #{tpu_custom_call.1} parent=5 // pred_check
        %p240 = pneg %p239
      $region38: #{tpu_custom_call.1} parent=5 // pred_check_branch
        %242 = sbr.rel (%p240) target = $region40
      $region39: #{tpu_custom_call.1} parent=5 // pred_region
        // Predicated region
        $region41: #{tpu_custom_call.1} parent=39 // pred_check
          %p243 = pneg %p37
        $region42: #{tpu_custom_call.1} parent=39 // pred_check_branch
          %245 = sbr.rel (%p243) target = $region44
        $region43: #{tpu_custom_call.1} parent=39 // pred_region
          %s246 = smul.u32 8, %s17
          %p247 = scmp.lt.s32.totalorder %s246, 15
          %s248 = scalar_select %p247, %s246, 15
          %s249 = smul.addr %s248, 8
          %s250 = scalar_lea.vmem %s0, %s249
          %s251 = smul.u32 8, %s17
        $region44: #{tpu_custom_call.1} parent=39 // pred_fallthru
          _
      $region40: #{tpu_custom_call.1} parent=5 // pred_fallthru
        _
      %p252 = scmp.le.s32.totalorder 1, %s17
      %p253 = scmp.lt.s32.totalorder %s17, 3
      %p254 = pnand %p252, %p253
      %p255 = pneg %p254
      // Predicated region
      $region45: #{tpu_custom_call.1} parent=5 // pred_check
        _
      $region46: #{tpu_custom_call.1} parent=5 // pred_check_branch
        %257 = sbr.rel (%p254) target = $region48
      $region47: #{tpu_custom_call.1} parent=5 // pred_region
        %s258 = ssub.s32 %s17, 1
        // Predicated region
        $region49: #{tpu_custom_call.1} parent=47 // pred_check
          %p259 = pneg %p148
        $region50: #{tpu_custom_call.1} parent=47 // pred_check_branch
          %261 = sbr.rel (%p259) target = $region52
        $region51: #{tpu_custom_call.1} parent=47 // pred_region
          %263 = dma.done [#allocation3], 2048
        $region52: #{tpu_custom_call.1} parent=47 // pred_fallthru
          _
        %s264 = smul.u32 8, %s22
        %p265 = scmp.lt.s32.totalorder %s264, 15
        %s266 = scalar_select %p265, %s264, 15
        %s267 = smul.addr %s266, 8
        %s268 = scalar_lea.vmem %s0, %s267
        %p269 = pneg %p43
        %p270 = pneg %p40
        %p271 = pneg %p64
        %p272 = pneg %p61
        %p273 = pneg %p85
        %p274 = pneg %p82
        %p275 = pneg %p106
        %p276 = pneg %p103
        %p277 = pneg %p127
        %p278 = pneg %p124
        %p279 = pneg %p148
        %p280 = pneg %p145
        %p281 = pneg %p169
        %p282 = pneg %p166
        %p283 = pneg %p195
        %p284 = pneg %p192
        %s285 = sand.u32 %s182, 1
        %s286 = scalar_lea.sflag [#allocation4], %s285
        %s287 = sand.u32 %s182, 1
        %s288 = smul.addr %s287, 64
        %s289 = scalar_lea.vmem [#allocation5], %s288
        %s290 = smul.u32 8, %s22
        %p291 = scmp.lt.s32.totalorder %s290, 15
        %s292 = scalar_select %p291, %s290, 15
        %s293 = smul.addr %s292, 8
        %s294 = scalar_lea.vmem %s0, %s293
        %s295 = smul.u32 8, %s22
        %s296 = smul.u32 8, %s22
        %v297 = vld [vmem:[%s294] sm:$0xff]
        %v298 = vld [vmem:[%s294 + $0x8] sm:$0xff]
        %v299 = vld [vmem:[%s294 + $0x10] sm:$0xff]
        %v300 = vld [vmem:[%s294 + $0x18] sm:$0xff]
        %v301 = vld [vmem:[%s294 + $0x20] sm:$0xff]
        %v302 = vld [vmem:[%s294 + $0x28] sm:$0xff]
        %v303 = vld [vmem:[%s294 + $0x30] sm:$0xff]
        %v304 = vld [vmem:[%s294 + $0x38] sm:$0xff]
        %v305 = vld [vmem:[%s1] sm:$0xff]
        %v306 = vld [vmem:[%s1 + $0x8] sm:$0xff]
        %v307 = vld [vmem:[%s1 + $0x10] sm:$0xff]
        %v308 = vld [vmem:[%s1 + $0x18] sm:$0xff]
        %v309 = vld [vmem:[%s2] sm:$0x1]
        %v311 = vperm.slane %v309, 0
        %vm313 = vcmask 261120
        %v315 = vsel %vm313, %v297, 0
        %v318 = vsel %vm313, %v298, 0
        %v321 = vsel %vm313, %v299, 0
        %v324 = vsel %vm313, %v300, 0
        %v327 = vsel %vm313, %v301, 0
        %v330 = vsel %vm313, %v302, 0
        %v333 = vsel %vm313, %v303, 0
        %v336 = vsel %vm313, %v304, 0
        %338 = vmatpush.msra.mxu0 0.0
        %339 = vmatpush.msra.mxu0 0.0
        %340 = vmatpush.msra.mxu0 0.0
        %341 = vmatpush.msra.mxu0 0.0
        %342 = vmatpush.msra.mxu0 0.0
        %343 = vmatpush.msra.mxu0 0.0
        %344 = vmatpush.msra.mxu0 0.0
        %345 = vmatpush.msra.mxu0 0.0
        %346 = vmatpush.msra.mxu0 0.0
        %347 = vmatpush.msra.mxu0 0.0
        %348 = vmatpush.msra.mxu0 0.0
        %349 = vmatpush.msra.mxu0 0.0
        %350 = vmatpush.msra.mxu0 %v308
        %351 = vmatpush.msra.mxu0 %v307
        %352 = vmatpush.msra.mxu0 %v306
        %353 = vmatpush.msra.mxu0 %v305
        %354 = vmatmul.f32.gmra.mxu0 %v315
        %v355 = vpop.f32.mrf.mxu0
        %v356 = vadd.f32 %v311, %v355
        %357 = vmatmul.f32.gmra.mxu0 %v318
        %v358 = vpop.f32.mrf.mxu0
        %v359 = vadd.f32 %v311, %v358
        %360 = vmatmul.f32.gmra.mxu0 %v321
        %v361 = vpop.f32.mrf.mxu0
        %v362 = vadd.f32 %v311, %v361
        %363 = vmatmul.f32.gmra.mxu0 %v324
        %v364 = vpop.f32.mrf.mxu0
        %v365 = vadd.f32 %v311, %v364
        %366 = vmatmul.f32.gmra.mxu0 %v327
        %v367 = vpop.f32.mrf.mxu0
        %v368 = vadd.f32 %v311, %v367
        %369 = vmatmul.f32.gmra.mxu0 %v330
        %v370 = vpop.f32.mrf.mxu0
        %v371 = vadd.f32 %v311, %v370
        %372 = vmatmul.f32.gmra.mxu0 %v333
        %v373 = vpop.f32.mrf.mxu0
        %v374 = vadd.f32 %v311, %v373
        %375 = vmatmul.f32.gmra.mxu0 %v336
        %v376 = vpop.f32.mrf.mxu0
        %v377 = vadd.f32 %v311, %v376
        %378 = vdwg.mxu0
        %v379 = vmax.f32 %v356, 0.0
        %v380 = vmax.f32 %v359, 0.0
        %v381 = vmax.f32 %v362, 0.0
        %v382 = vmax.f32 %v365, 0.0
        %v383 = vmax.f32 %v368, 0.0
        %v384 = vmax.f32 %v371, 0.0
        %v385 = vmax.f32 %v374, 0.0
        %v386 = vmax.f32 %v377, 0.0
        %v387 = vld [vmem:[%s3] sm:$0xff]
        %v388 = vld [vmem:[%s3 + $0x8] sm:$0xff]
        %v389 = vld [vmem:[%s3 + $0x10] sm:$0xff]
        %v390 = vld [vmem:[%s3 + $0x18] sm:$0xff]
        %v391 = vld [vmem:[%s3 + $0x20] sm:$0xff]
        %v392 = vld [vmem:[%s3 + $0x28] sm:$0xff]
        %v393 = vld [vmem:[%s3 + $0x30] sm:$0xff]
        %v394 = vld [vmem:[%s3 + $0x38] sm:$0xff]
        %v395 = vld [vmem:[%s3 + $0x40] sm:$0xff]
        %v396 = vld [vmem:[%s3 + $0x48] sm:$0xff]
        %v397 = vld [vmem:[%s3 + $0x50] sm:$0xff]
        %v398 = vld [vmem:[%s3 + $0x58] sm:$0xff]
        %v399 = vld [vmem:[%s3 + $0x60] sm:$0xff]
        %v400 = vld [vmem:[%s3 + $0x68] sm:$0xff]
        %v401 = vld [vmem:[%s3 + $0x70] sm:$0xff]
        %v402 = vld [vmem:[%s3 + $0x78] sm:$0xff]
        %v403 = vld [vmem:[%s4] sm:$0x1]
        %v405 = vperm.slane %v403, 0
        %407 = vmatpush.msra.mxu0 %v402
        %408 = vmatpush.msra.mxu0 %v401
        %409 = vmatpush.msra.mxu0 %v400
        %410 = vmatpush.msra.mxu0 %v399
        %411 = vmatpush.msra.mxu0 %v398
        %412 = vmatpush.msra.mxu0 %v397
        %413 = vmatpush.msra.mxu0 %v396
        %414 = vmatpush.msra.mxu0 %v395
        %415 = vmatpush.msra.mxu0 %v394
        %416 = vmatpush.msra.mxu0 %v393
        %417 = vmatpush.msra.mxu0 %v392
        %418 = vmatpush.msra.mxu0 %v391
        %419 = vmatpush.msra.mxu0 %v390
        %420 = vmatpush.msra.mxu0 %v389
        %421 = vmatpush.msra.mxu0 %v388
        %422 = vmatpush.msra.mxu0 %v387
        %423 = vmatmul.f32.gmra.mxu0 %v379
        %v424 = vpop.f32.mrf.mxu0
        %v425 = vadd.f32 %v405, %v424
        %426 = vmatmul.f32.gmra.mxu0 %v380
        %v427 = vpop.f32.mrf.mxu0
        %v428 = vadd.f32 %v405, %v427
        %429 = vmatmul.f32.gmra.mxu0 %v381
        %v430 = vpop.f32.mrf.mxu0
        %v431 = vadd.f32 %v405, %v430
        %432 = vmatmul.f32.gmra.mxu0 %v382
        %v433 = vpop.f32.mrf.mxu0
        %v434 = vadd.f32 %v405, %v433
        %435 = vmatmul.f32.gmra.mxu0 %v383
        %v436 = vpop.f32.mrf.mxu0
        %v437 = vadd.f32 %v405, %v436
        %438 = vmatmul.f32.gmra.mxu0 %v384
        %v439 = vpop.f32.mrf.mxu0
        %v440 = vadd.f32 %v405, %v439
        %441 = vmatmul.f32.gmra.mxu0 %v385
        %v442 = vpop.f32.mrf.mxu0
        %v443 = vadd.f32 %v405, %v442
        %444 = vmatmul.f32.gmra.mxu0 %v386
        %v445 = vpop.f32.mrf.mxu0
        %v446 = vadd.f32 %v405, %v445
        %447 = vdwg.mxu0
        %v448 = vmax.f32 %v425, 0.0
        %v449 = vmax.f32 %v428, 0.0
        %v450 = vmax.f32 %v431, 0.0
        %v451 = vmax.f32 %v434, 0.0
        %v452 = vmax.f32 %v437, 0.0
        %v453 = vmax.f32 %v440, 0.0
        %v454 = vmax.f32 %v443, 0.0
        %v455 = vmax.f32 %v446, 0.0
        %v456 = vld [vmem:[#allocation2] sm:$0xff]
        %v457 = vld [vmem:[#allocation2 + $0x8] sm:$0xff]
        %v458 = vld [vmem:[#allocation2 + $0x10] sm:$0xff]
        %v459 = vld [vmem:[#allocation2 + $0x18] sm:$0xff]
        %v460 = vld [vmem:[#allocation2 + $0x20] sm:$0xff]
        %v461 = vld [vmem:[#allocation2 + $0x28] sm:$0xff]
        %v462 = vld [vmem:[#allocation2 + $0x30] sm:$0xff]
        %v463 = vld [vmem:[#allocation2 + $0x38] sm:$0xff]
        %v464 = vld [vmem:[#allocation2 + $0x40] sm:$0xff]
        %v465 = vld [vmem:[#allocation2 + $0x48] sm:$0xff]
        %v466 = vld [vmem:[#allocation2 + $0x50] sm:$0xff]
        %v467 = vld [vmem:[#allocation2 + $0x58] sm:$0xff]
        %v468 = vld [vmem:[#allocation2 + $0x60] sm:$0xff]
        %v469 = vld [vmem:[#allocation2 + $0x68] sm:$0xff]
        %v470 = vld [vmem:[#allocation2 + $0x70] sm:$0xff]
        %v471 = vld [vmem:[#allocation2 + $0x78] sm:$0xff]
        %v472 = vld [vmem:[%s6] sm:$0x1]
        %v474 = vperm.slane %v472, 0
        %476 = vmatpush.msra.mxu0 %v471
        %477 = vmatpush.msra.mxu0 %v470
        %478 = vmatpush.msra.mxu0 %v469
        %479 = vmatpush.msra.mxu0 %v468
        %480 = vmatpush.msra.mxu0 %v467
        %481 = vmatpush.msra.mxu0 %v466
        %482 = vmatpush.msra.mxu0 %v465
        %483 = vmatpush.msra.mxu0 %v464
        %484 = vmatpush.msra.mxu0 %v463
        %485 = vmatpush.msra.mxu0 %v462
        %486 = vmatpush.msra.mxu0 %v461
        %487 = vmatpush.msra.mxu0 %v460
        %488 = vmatpush.msra.mxu0 %v459
        %489 = vmatpush.msra.mxu0 %v458
        %490 = vmatpush.msra.mxu0 %v457
        %491 = vmatpush.msra.mxu0 %v456
        %492 = vmatmul.f32.gmra.mxu0 %v448
        %v493 = vpop.f32.mrf.mxu0
        %v494 = vadd.f32 %v474, %v493
        %495 = vmatmul.f32.gmra.mxu0 %v449
        %v496 = vpop.f32.mrf.mxu0
        %v497 = vadd.f32 %v474, %v496
        %498 = vmatmul.f32.gmra.mxu0 %v450
        %v499 = vpop.f32.mrf.mxu0
        %v500 = vadd.f32 %v474, %v499
        %501 = vmatmul.f32.gmra.mxu0 %v451
        %v502 = vpop.f32.mrf.mxu0
        %v503 = vadd.f32 %v474, %v502
        %504 = vmatmul.f32.gmra.mxu0 %v452
        %v505 = vpop.f32.mrf.mxu0
        %v506 = vadd.f32 %v474, %v505
        %507 = vmatmul.f32.gmra.mxu0 %v453
        %v508 = vpop.f32.mrf.mxu0
        %v509 = vadd.f32 %v474, %v508
        %510 = vmatmul.f32.gmra.mxu0 %v454
        %v511 = vpop.f32.mrf.mxu0
        %v512 = vadd.f32 %v474, %v511
        %513 = vmatmul.f32.gmra.mxu0 %v455
        %v514 = vpop.f32.mrf.mxu0
        %v515 = vadd.f32 %v474, %v514
        %516 = vdwg.mxu0
        %517 = vst [vmem:[%s289] sm:$0xff] %v494
        %518 = vst [vmem:[%s289 + $0x8] sm:$0xff] %v497
        %519 = vst [vmem:[%s289 + $0x10] sm:$0xff] %v500
        %520 = vst [vmem:[%s289 + $0x18] sm:$0xff] %v503
        %521 = vst [vmem:[%s289 + $0x20] sm:$0xff] %v506
        %522 = vst [vmem:[%s289 + $0x28] sm:$0xff] %v509
        %523 = vst [vmem:[%s289 + $0x30] sm:$0xff] %v512
        %524 = vst [vmem:[%s289 + $0x38] sm:$0xff] %v515
        %s525 = sand.u32 %s182, 1
        %s526 = scalar_lea.sflag [#allocation4], %s525
        %s527 = sand.u32 %s182, 1
        %s528 = smul.addr %s527, 64
        %s529 = scalar_lea.vmem [#allocation5], %s528
        // Predicated region
        $region53: #{tpu_custom_call.1} parent=47 // pred_check
          %p530 = pneg %p192
        $region54: #{tpu_custom_call.1} parent=47 // pred_check_branch
          %532 = sbr.rel (%p530) target = $region56
        $region55: #{tpu_custom_call.1} parent=47 // pred_region
          %s533 = smul.u32 8, %s22
          %535 = vsyncadd %s526, 0
          %s536 = smul.addr %s533, 8
          %s537 = scalar_lea.hbm %s7, %s536
          %s538 = sshll.u32 %s529, 4
          %s539 = int_to_ptr.vmem [resolvable:$true] %s538
          %s540 = sshll.u32 %s537, 4
          %s541 = int_to_ptr.hbm [resolvable:$true] %s540
          %546 = dma.vmem_to_hbm [thread:$0]  %s539, 1024, %s541, %s526, 128, 128, 8
        $region56: #{tpu_custom_call.1} parent=47 // pred_fallthru
          _
      $region48: #{tpu_custom_call.1} parent=5 // pred_fallthru
        _
      %p547 = scmp.le.s32.totalorder 2, %s17
      // Predicated region
      $region57: #{tpu_custom_call.1} parent=5 // pred_check
        %p548 = pneg %p547
      $region58: #{tpu_custom_call.1} parent=5 // pred_check_branch
        %550 = sbr.rel (%p548) target = $region60
      $region59: #{tpu_custom_call.1} parent=5 // pred_region
        %s551 = ssub.s32 %s17, 2
        // Predicated region
        $region61: #{tpu_custom_call.1} parent=59 // pred_check
          %p552 = pneg %p198
        $region62: #{tpu_custom_call.1} parent=59 // pred_check_branch
          %554 = sbr.rel (%p552) target = $region64
        $region63: #{tpu_custom_call.1} parent=59 // pred_region
          %s555 = sand.u32 %s183, 1
          %s556 = scalar_lea.sflag [#allocation4], %s555
          %s557 = sand.u32 %s183, 1
          %s558 = smul.addr %s557, 64
          %s559 = scalar_lea.vmem [#allocation5], %s558
          %561 = dma.done %s556, 1024
        $region64: #{tpu_custom_call.1} parent=59 // pred_fallthru
          _
      $region60: #{tpu_custom_call.1} parent=5 // pred_fallthru
        _
    $region6: #{tpu_custom_call.1} parent=1 // loop_footer
      %s21 = sadd.s32 1, %s17
    $region7: #{tpu_custom_call.1} parent=1 // loop_footer_branch
      %16 = sbr.rel target = $region3
    $region8: #{tpu_custom_call.1} parent=1 // loop_exit
      _
    %562 = vsyncpa [#allocation3], 1
    %s563 = scalar_lea.sflag [#allocation3], 1
    %564 = vsyncpa %s563, 1
    %565 = vsyncpa [#allocation4], 1
    %s566 = scalar_lea.sflag [#allocation4], 1
    %567 = vsyncpa %s566, 1

</llo_original>
